<compile_context>
chip_gen: v6e
topology: v6e:2x2x1
jax: 0.10.0
libtpu: 0.0.40
codegen_flags: <defaults>
</compile_context>

<pallas_src>
import functools
import numpy as np
import jax
import jax.numpy as jnp
from jax import lax
from jax.experimental import pallas as pl
from jax.experimental.pallas import tpu as pltpu

_LANE = 128
_DEFAULT_BLOCK_BYTES = 1 << 20   # ~1 MiB padded payload per buffer (fits all gens)


def _round_up(v, m):
    return (v + m - 1) // m * m


def _select_per_group(idx, values, group_size):
    """out[i] = values[min(idx[i] // group_size, len(values)-1)].

    Built as a descending where-chain against constant thresholds (no runtime
    integer division).  `values` are Python floats, so everything folds to
    vector-immediate compares/selects on a tiny (sublane, 1-lane) vreg.
    """
    out = jnp.full(idx.shape, jnp.float32(values[-1]), jnp.float32)
    for c in range(len(values) - 2, -1, -1):
        out = jnp.where(idx < (c + 1) * group_size, jnp.float32(values[c]), out)
    return out


# ----------------------------------------------------------------------------
# Kernels: y = x * scale[channel] + offset[channel]   (fused per-element FMA)
# ----------------------------------------------------------------------------
def _affine_chan_sublane_kernel(x_ref, out_ref, *, scale, offset):
    # Layout B: block (1, C, T_HW) — channels on sublanes, HW tile on lanes.
    C = x_ref.shape[1]
    c_idx = lax.broadcasted_iota(jnp.int32, (1, C, 1), 1)
    s = _select_per_group(c_idx, scale, 1)
    o = _select_per_group(c_idx, offset, 1)
    out_ref[...] = (x_ref[...].astype(jnp.float32) * s + o).astype(out_ref.dtype)


def _affine_row_sublane_kernel(x_ref, out_ref, *, scale, offset, rows_per_chan):
    # Layout A: block (1, T_ROWS, W) — rows (= c*H + h) on sublanes, W on lanes.
    t_rows = x_ref.shape[1]
    row = pl.program_id(1) * t_rows + lax.broadcasted_iota(
        jnp.int32, (1, t_rows, 1), 1)
    s = _select_per_group(row, scale, rows_per_chan)
    o = _select_per_group(row, offset, rows_per_chan)
    out_ref[...] = (x_ref[...].astype(jnp.float32) * s + o).astype(out_ref.dtype)


# ----------------------------------------------------------------------------
# Wrapper: one pallas_call, layout + tile size chosen from the shape/dtype.
# ----------------------------------------------------------------------------
def _per_channel_affine(x, scale, offset, *,
                        target_block_bytes=_DEFAULT_BLOCK_BYTES,
                        donate=False):
    """y[b,c,h,w] = x[b,c,h,w] * scale[c] + offset[c] as one Pallas kernel."""
    B, C, H, W = x.shape
    HW = H * W
    itemsize = jnp.dtype(x.dtype).itemsize
    pack = max(8, 32 // itemsize)                 # sublanes per packed (8,128) tile
    scale = tuple(float(v) for v in np.asarray(scale).reshape(-1))
    offset = tuple(float(v) for v in np.asarray(offset).reshape(-1))
    assert len(scale) == C and len(offset) == C

    if W % _LANE == 0:
        # Layout A: fold C*H into the sublane axis (full sublane tiles).
        rows = C * H
        x3 = x.reshape(B, rows, W)
        max_rows = max(pack, (target_block_bytes // (W * itemsize)) // pack * pack)
        if rows <= max_rows:
            t_rows, grid_t = rows, 1
        else:
            t_rows, grid_t = max_rows, pl.cdiv(rows, max_rows)
        kernel = functools.partial(_affine_row_sublane_kernel,
                                   scale=scale, offset=offset, rows_per_chan=H)
        block = (1, t_rows, W)
        index_map = lambda b, t: (b, t, 0)
        padded_block_bytes = _round_up(t_rows, pack) * _round_up(W, _LANE) * itemsize
    else:
        # Layout B: lane-dense (B, C, HW) view, tile the HW (lane) axis.
        x3 = x.reshape(B, C, HW)
        max_hw = max(_LANE, (target_block_bytes //
                             (_round_up(C, pack) * itemsize)) // _LANE * _LANE)
        if HW <= max_hw:
            t_hw, grid_t = HW, 1
        else:
            t_hw, grid_t = max_hw, pl.cdiv(HW, max_hw)
        kernel = functools.partial(_affine_chan_sublane_kernel,
                                   scale=scale, offset=offset)
        block = (1, C, t_hw)
        index_map = lambda b, t: (b, 0, t)
        padded_block_bytes = _round_up(C, pack) * _round_up(t_hw, _LANE) * itemsize

    # Double-buffered input + output (4 buffers) plus headroom, stated explicitly.
    vmem_limit = int(min(100 << 20, max(8 << 20, 6 * padded_block_bytes)))

    out = pl.pallas_call(
        kernel,
        out_shape=jax.ShapeDtypeStruct(x3.shape, x.dtype),
        grid=(B, grid_t),
        in_specs=[pl.BlockSpec(block, index_map)],
        out_specs=pl.BlockSpec(block, index_map),
        input_output_aliases=({0: 0} if donate else {}),
        compiler_params=pltpu.CompilerParams(
            dimension_semantics=("parallel", "parallel"),
            vmem_limit_bytes=vmem_limit),
    )(x3)
    return out.reshape(B, C, H, W)


# ----------------------------------------------------------------------------
# RangeNormalizer: forward / unnormalize (same kernel, different constants).
# ----------------------------------------------------------------------------
class RangeNormalizer:
    """Scales selected channel dims to a destination range.

    normalizer[c] = shapes[c] - 1 (max coordinate value per dimension).
    """

    def __init__(self, shapes):
        self.normalizer = np.asarray(shapes, np.float32) - 1.0   # (len(shapes),)

    def _constants(self, C, dims, a, b):
        scale = np.ones((C,), np.float32)
        offset = np.zeros((C,), np.float32)
        for d in dims:
            assert 0 <= d < C and d < len(self.normalizer), f"dim {d} out of range"
            scale[d] = a[d]
            offset[d] = b[d]
        return scale, offset

    def forward(self, x, dst=(0.0, 1.0), dims=(0, 1, 2)):
        B, C, H, W = x.shape
        a = {d: (dst[1] - dst[0]) / self.normalizer[d] for d in dims}
        b = {d: dst[0] for d in dims}
        scale, offset = self._constants(C, dims, a, b)
        return _per_channel_affine(x, scale, offset)

    __call__ = forward

    def unnormalize(self, normalized_x, src=(0.0, 1.0), dims=(0, 1, 2)):
        B, C, H, W = normalized_x.shape
        a = {d: self.normalizer[d] / (src[1] - src[0]) for d in dims}
        b = {d: -src[0] * self.normalizer[d] / (src[1] - src[0]) for d in dims}
        scale, offset = self._constants(C, dims, a, b)
        return _per_channel_affine(normalized_x, scale, offset)


# ----------------------------------------------------------------------------
# Pure-JAX reference (mirrors the PyTorch forward exactly) for self-check.
# ----------------------------------------------------------------------------
def _ref_forward(x, shapes, dst=(0.0, 1.0), dims=(0, 1, 2)):
    norm = np.asarray(shapes, np.float32) - 1.0
    y = x
    for d in dims:
        y = y.at[:, d].set((dst[1] - dst[0]) * (x[:, d] / norm[d]) + dst[0])
    return y


if __name__ == "__main__":
    key = jax.random.PRNGKey(0)

    # --- Main check: spec-sized input (B, C, H, W) = (2, 4, 16, 16) ---------
    B, C, H, W = 2, 4, 16, 16
    shapes = (16, 16, 8)                      # H, W, T maxima
    rn = RangeNormalizer(shapes)
    x = jax.random.uniform(key, (B, C, H, W), jnp.float32, 0.0, 15.0)

    y = jax.block_until_ready(jax.jit(rn.forward)(x))
    assert y.shape == (B, C, H, W) and y.dtype == x.dtype
    np.testing.assert_allclose(np.asarray(y), np.asarray(_ref_forward(x, shapes)),
                               rtol=1e-6, atol=1e-6)
    # Roundtrip: unnormalize(forward(x)) == x (incl. untouched channel 3).
    x_rt = jax.block_until_ready(jax.jit(rn.unnormalize)(y))
    np.testing.assert_allclose(np.asarray(x_rt), np.asarray(x), rtol=1e-5, atol=1e-5)

    # --- Layout A path (W % 128 == 0: channels*H folded onto sublanes) ------
    xa = jax.random.uniform(jax.random.PRNGKey(0), (1, 4, 2, 128), jnp.float32, 0.0, 7.0)
    rn_a = RangeNormalizer((2, 128, 8))
    ya = jax.block_until_ready(jax.jit(rn_a.forward)(xa))
    np.testing.assert_allclose(np.asarray(ya),
                               np.asarray(_ref_forward(xa, (2, 128, 8))),
                               rtol=1e-6, atol=1e-6)

    # --- Tiled / edge-block paths (forced tiny block budget) ----------------
    sb = np.array([1.0 / 15.0, 1.0 / 15.0, 1.0 / 7.0, 1.0], np.float32)
    ob = np.zeros((4,), np.float32)

    xb = jax.random.uniform(key, (1, 4, 16, 20), jnp.float32, 0.0, 15.0)   # HW=320
    yb = jax.block_until_ready(
        jax.jit(lambda v: _per_channel_affine(v, sb, ob, target_block_bytes=4096))(xb))
    np.testing.assert_allclose(np.asarray(yb),
                               np.asarray(xb) * sb.reshape(1, 4, 1, 1),
                               rtol=1e-6, atol=1e-6)

    xc = jax.random.uniform(key, (1, 4, 8, 128), jnp.float32, 0.0, 15.0)   # rows=32
    yc = jax.block_until_ready(
        jax.jit(lambda v: _per_channel_affine(v, sb, ob, target_block_bytes=4096))(xc))
    np.testing.assert_allclose(np.asarray(yc),
                               np.asarray(xc) * sb.reshape(1, 4, 1, 1),
                               rtol=1e-6, atol=1e-6)

    print("KERNEL_OK")
</pallas_src>

<mosaic_0001>
module attributes {stable_mosaic.version = 11 : i64} {
  func.func @_affine_chan_sublane_kernel(%arg0: i32, %arg1: i32, %arg2: memref<1x4x256xf32, #tpu.memory_space<vmem>>, %arg3: memref<1x4x256xf32, #tpu.memory_space<vmem>>) attributes {dimension_semantics = [#tpu.dimension_semantics<parallel>, #tpu.dimension_semantics<parallel>], iteration_bounds = array<i64: 2, 1>, scalar_prefetch = 0 : i64, scratch_operands = 0 : i64, tpu.core_type = #tpu.core_type<tc>, window_params = [{transform_indices = @transform_0, window_bounds = array<i64: 1, 4, 256>}, {transform_indices = @transform_1, window_bounds = array<i64: 1, 4, 256>}]} {
    %0 = tpu.iota {dimensions = array<i32: 1>} : vector<1x4x1xi32>
    %cst = arith.constant 1.000000e+00 : f32
    %1 = vector.broadcast %cst : f32 to vector<1x4x1xf32>
    %c3_i32 = arith.constant 3 : i32
    %2 = vector.broadcast %c3_i32 : i32 to vector<1x4x1xi32>
    %3 = arith.cmpi slt, %0, %2 : vector<1x4x1xi32>
    %cst_0 = arith.constant 0.142857149 : f32
    %4 = vector.broadcast %cst_0 : f32 to vector<1x4x1xf32>
    %5 = arith.select %3, %4, %1 : vector<1x4x1xi1>, vector<1x4x1xf32>
    %c2_i32 = arith.constant 2 : i32
    %6 = vector.broadcast %c2_i32 : i32 to vector<1x4x1xi32>
    %7 = arith.cmpi slt, %0, %6 : vector<1x4x1xi32>
    %cst_1 = arith.constant 0.0666666701 : f32
    %8 = vector.broadcast %cst_1 : f32 to vector<1x4x1xf32>
    %9 = arith.select %7, %8, %5 : vector<1x4x1xi1>, vector<1x4x1xf32>
    %c1_i32 = arith.constant 1 : i32
    %10 = vector.broadcast %c1_i32 : i32 to vector<1x4x1xi32>
    %11 = arith.cmpi slt, %0, %10 : vector<1x4x1xi32>
    %cst_2 = arith.constant 0.0666666701 : f32
    %12 = vector.broadcast %cst_2 : f32 to vector<1x4x1xf32>
    %13 = arith.select %11, %12, %9 : vector<1x4x1xi1>, vector<1x4x1xf32>
    %cst_3 = arith.constant 0.000000e+00 : f32
    %14 = vector.broadcast %cst_3 : f32 to vector<1x4x1xf32>
    %c3_i32_4 = arith.constant 3 : i32
    %15 = vector.broadcast %c3_i32_4 : i32 to vector<1x4x1xi32>
    %16 = arith.cmpi slt, %0, %15 : vector<1x4x1xi32>
    %cst_5 = arith.constant 0.000000e+00 : f32
    %17 = vector.broadcast %cst_5 : f32 to vector<1x4x1xf32>
    %18 = arith.select %16, %17, %14 : vector<1x4x1xi1>, vector<1x4x1xf32>
    %c2_i32_6 = arith.constant 2 : i32
    %19 = vector.broadcast %c2_i32_6 : i32 to vector<1x4x1xi32>
    %20 = arith.cmpi slt, %0, %19 : vector<1x4x1xi32>
    %cst_7 = arith.constant 0.000000e+00 : f32
    %21 = vector.broadcast %cst_7 : f32 to vector<1x4x1xf32>
    %22 = arith.select %20, %21, %18 : vector<1x4x1xi1>, vector<1x4x1xf32>
    %c1_i32_8 = arith.constant 1 : i32
    %23 = vector.broadcast %c1_i32_8 : i32 to vector<1x4x1xi32>
    %24 = arith.cmpi slt, %0, %23 : vector<1x4x1xi32>
    %cst_9 = arith.constant 0.000000e+00 : f32
    %25 = vector.broadcast %cst_9 : f32 to vector<1x4x1xf32>
    %26 = arith.select %24, %25, %22 : vector<1x4x1xi1>, vector<1x4x1xf32>
    %c0 = arith.constant 0 : index
    %c0_10 = arith.constant 0 : index
    %c0_11 = arith.constant 0 : index
    %27 = vector.load %arg2[%c0, %c0_10, %c0_11] : memref<1x4x256xf32, #tpu.memory_space<vmem>>, vector<1x4x256xf32>
    %28 = vector.broadcast %13 : vector<1x4x1xf32> to vector<1x4x256xf32>
    %29 = arith.mulf %27, %28 : vector<1x4x256xf32>
    %30 = vector.broadcast %26 : vector<1x4x1xf32> to vector<1x4x256xf32>
    %31 = arith.addf %29, %30 : vector<1x4x256xf32>
    %c0_12 = arith.constant 0 : index
    %c0_13 = arith.constant 0 : index
    %c0_14 = arith.constant 0 : index
    %32 = vector.load %arg3[%c0_12, %c0_13, %c0_14] : memref<1x4x256xf32, #tpu.memory_space<vmem>>, vector<1x4x256xf32>
    tpu.vector_store %arg3[%c0_12, %c0_13, %c0_14], %31 {strides = array<i32>} : memref<1x4x256xf32, #tpu.memory_space<vmem>>, vector<1x4x256xf32>,
    return
  }
  func.func @transform_0(%arg0: i32, %arg1: i32) -> (i32, i32, i32) {
    %c0_i32 = arith.constant 0 : i32
    %c0_i32_0 = arith.constant 0 : i32
    return %arg0, %c0_i32, %arg1 : i32, i32, i32
  }
  func.func @transform_1(%arg0: i32, %arg1: i32) -> (i32, i32, i32) {
    %c0_i32 = arith.constant 0 : i32
    %c0_i32_0 = arith.constant 0 : i32
    return %arg0, %c0_i32, %arg1 : i32, i32, i32
  }
}

</mosaic_0001>

<llo_original>
// kernel: forward.1
$region0: #{forward.1}
  #allocation0 [shape = 'u32[]', space=smem, size = 0x4, offset = 0x4, fixed_abs, tag = 'smem constant byte address 0x4 - core index']
  #allocation1 [shape = 'u32[144,128]{1,0:T(1,128)}', space=vmem, size = 0x12000, scoped, tag = 'internal scratch']
  %s0 = inlined_call_operand.vmem [shape: f32[2,4,256], index: 0, kind: input, shape index: {}]
  %s1 = inlined_call_operand.vmem [shape: f32[2,4,256], index: 1, kind: output, shape index: {}]
  %s2 = sld [smem:[#allocation0]]
  $region37: #{forward.1} parent=0
    _
  %s4 = ssub.s32 1, %s2
  %s5 = scalar_select 0, %s4, %s2
  loop: start=0, step=1, limit=4
  $region2: #{forward.1} parent=0 // loop_pre_header
    _
  $region3: #{forward.1} parent=0 // loop_header
    %s7 = sphi 0, %s11
    %p8 = scmp.ge.s32.totalorder %s7, 4
    %s14 = sphi 0, %s26
    %s15 = sphi 0, %s22
    %s16 = sphi 0, %s14
    %s17 = sphi 0, %s15
    %s18 = sphi 0, %s16
    %s19 = sphi 0, %s17
    %s31 = sphi 0, %s33
    %s34 = sphi 0, %s31
    %s35 = sphi 0, %s34
    %s51 = sphi 0, %s35
    %s59 = sphi 0, %s61
    %s62 = sphi 0, %s59
    %s63 = sphi 0, %s62
    %s79 = sphi 0, %s63
  $region4: #{forward.1} parent=0 // loop_header_branch
    %10 = sbr.rel (%p8) target = $region8
  $region5: #{forward.1} parent=0 // loop_body
    %s12 = ssub.s32 %s7, 1
    %s13 = ssub.s32 %s7, 2
    %s20 = sadd.s32 1, %s15
    %p21 = scmp.ge.s32.totalorder %s20, 1
    %s22 = scalar_select %p21, 0, %s20
    %s23 = sadd.s32 1, %s14
    %s24 = scalar_select %p21, %s23, %s14
    %p25 = scmp.ge.s32.totalorder %s24, 2
    %s26 = scalar_select %p25, 0, %s24
    %s27 = ssub.s32 %s14, %s26
    %s28 = ssub.s32 %s15, %s22
    %s29 = sor.u32 %s27, %s28
    %p30 = scmp.eq.s32.totalorder %s29, 0
    %s32 = sadd.s32 %s31, 1
    %s33 = scalar_select %p30, %s31, %s32
    %p36 = pneg %p30
    %p37 = scmp.eq.s32.totalorder %s7, 1
    %p38 = por %p36, %p37
    %p39 = scmp.ne.s32.totalorder %s31, %s34
    %p40 = scmp.eq.s32.totalorder %s7, 0
    %p41 = por %p39, %p40
    %p42 = scmp.ne.s32.totalorder %s31, %s34
    %p43 = scmp.eq.s32.totalorder %s12, 1
    %p44 = por %p42, %p43
    %p45 = scmp.ne.s32.totalorder %s34, %s35
    %p46 = scmp.eq.s32.totalorder %s12, 0
    %p47 = por %p45, %p46
    %p48 = scmp.ne.s32.totalorder %s34, %s35
    %p49 = scmp.eq.s32.totalorder %s13, 1
    %p50 = por %p48, %p49
    %p52 = scmp.ne.s32.totalorder %s35, %s51
    %p53 = scmp.eq.s32.totalorder %s13, 0
    %p54 = por %p52, %p53
    %s55 = ssub.s32 %s14, %s26
    %s56 = ssub.s32 %s15, %s22
    %s57 = sor.u32 %s55, %s56
    %p58 = scmp.eq.s32.totalorder %s57, 0
    %s60 = sadd.s32 %s59, 1
    %s61 = scalar_select %p58, %s59, %s60
    %p64 = pneg %p58
    %p65 = scmp.eq.s32.totalorder %s7, 1
    %p66 = por %p64, %p65
    %p67 = scmp.ne.s32.totalorder %s59, %s62
    %p68 = scmp.eq.s32.totalorder %s7, 0
    %p69 = por %p67, %p68
    %p70 = scmp.ne.s32.totalorder %s59, %s62
    %p71 = scmp.eq.s32.totalorder %s12, 1
    %p72 = por %p70, %p71
    %p73 = scmp.ne.s32.totalorder %s62, %s63
    %p74 = scmp.eq.s32.totalorder %s12, 0
    %p75 = por %p73, %p74
    %p76 = scmp.ne.s32.totalorder %s62, %s63
    %p77 = scmp.eq.s32.totalorder %s13, 1
    %p78 = por %p76, %p77
    %p80 = scmp.ne.s32.totalorder %s63, %s79
    %p81 = scmp.eq.s32.totalorder %s13, 0
    %p82 = por %p80, %p81
    %p83 = scmp.le.s32.totalorder 1, %s7
    %p84 = scmp.lt.s32.totalorder %s7, 3
    %p85 = pnand %p83, %p84
    %p86 = pneg %p85
    // Predicated region
    $region9: #{forward.1} parent=5 // pred_check
      _
    $region10: #{forward.1} parent=5 // pred_check_branch
      %88 = sbr.rel (%p85) target = $region12
    $region11: #{forward.1} parent=5 // pred_region
      %s89 = ssub.s32 %s7, 1
    $region12: #{forward.1} parent=5 // pred_fallthru
      _
    %p90 = scmp.lt.s32.totalorder %s7, 2
    // Predicated region
    $region13: #{forward.1} parent=5 // pred_check
      %p91 = pneg %p90
    $region14: #{forward.1} parent=5 // pred_check_branch
      %93 = sbr.rel (%p91) target = $region16
    $region15: #{forward.1} parent=5 // pred_region
      // Predicated region
      $region17: #{forward.1} parent=15 // pred_check
        %p94 = pneg %p41
      $region18: #{forward.1} parent=15 // pred_check_branch
        %96 = sbr.rel (%p94) target = $region20
      $region19: #{forward.1} parent=15 // pred_region
        %s97 = smul.u32 2, %s15
        %p98 = scmp.lt.s32.totalorder %s14, 1
        %s99 = scalar_select %p98, %s14, 1
        %p100 = scmp.lt.s32.totalorder %s97, 1
        %s101 = scalar_select %p100, %s97, 1
        %s102 = smul.addr %s99, 2
        %s103 = sadd.s32 %s101, %s102
        %s104 = smul.addr %s103, 4
        %s105 = scalar_lea.vmem %s0, %s104
        %s106 = smul.u32 2, %s15
      $region20: #{forward.1} parent=15 // pred_fallthru
        _
    $region16: #{forward.1} parent=5 // pred_fallthru
      _
    %p107 = scmp.le.s32.totalorder 1, %s7
    %p108 = scmp.lt.s32.totalorder %s7, 3
    %p109 = pnand %p107, %p108
    %p110 = pneg %p109
    // Predicated region
    $region21: #{forward.1} parent=5 // pred_check
      _
    $region22: #{forward.1} parent=5 // pred_check_branch
      %112 = sbr.rel (%p109) target = $region24
    $region23: #{forward.1} parent=5 // pred_region
      %s113 = ssub.s32 %s7, 1
      %s114 = smul.u32 2, %s17
      %p115 = scmp.lt.s32.totalorder %s16, 1
      %s116 = scalar_select %p115, %s16, 1
      %p117 = scmp.lt.s32.totalorder %s114, 1
      %s118 = scalar_select %p117, %s114, 1
      %s119 = smul.addr %s116, 2
      %s120 = sadd.s32 %s118, %s119
      %s121 = smul.addr %s120, 4
      %s122 = scalar_lea.vmem %s0, %s121
      %p123 = pneg %p47
      %p124 = pneg %p44
      %p125 = pneg %p75
      %p126 = pneg %p72
      %s127 = smul.u32 2, %s17
      %p128 = scmp.lt.s32.totalorder %s16, 1
      %s129 = scalar_select %p128, %s16, 1
      %p130 = scmp.lt.s32.totalorder %s127, 1
      %s131 = scalar_select %p130, %s127, 1
      %s132 = smul.addr %s129, 2
      %s133 = sadd.s32 %s131, %s132
      %s134 = smul.addr %s133, 4
      %s135 = scalar_lea.vmem %s1, %s134
      %s136 = smul.u32 2, %s17
      %p137 = scmp.lt.s32.totalorder %s16, 1
      %s138 = scalar_select %p137, %s16, 1
      %p139 = scmp.lt.s32.totalorder %s136, 1
      %s140 = scalar_select %p139, %s136, 1
      %s141 = smul.addr %s138, 2
      %s142 = sadd.s32 %s140, %s141
      %s143 = smul.addr %s142, 4
      %s144 = scalar_lea.vmem %s0, %s143
      %s145 = smul.u32 2, %s17
      %s146 = smul.u32 2, %s17
      %p147 = scmp.lt.s32.totalorder %s16, 1
      %s148 = scalar_select %p147, %s16, 1
      %p149 = scmp.lt.s32.totalorder %s146, 1
      %s150 = scalar_select %p149, %s146, 1
      %s151 = smul.addr %s148, 2
      %s152 = sadd.s32 %s150, %s151
      %s153 = smul.addr %s152, 4
      %s154 = scalar_lea.vmem %s1, %s153
      %s155 = smul.u32 2, %s17
      %v156 = vlaneseq
      %v157 = vshrl.u32 %v156, 7
      %vm158 = vcmp.lt.s32.totalorder %v157, 3
      %v159 = vsel %vm158, 0.14285715, 1.0
      %vm160 = vcmp.lt.s32.totalorder %v157, 2
      %v161 = vsel %vm160, 0.06666667, %v159
      %vm162 = vcmp.lt.s32.totalorder %v157, 1
      %v163 = vsel %vm162, 0.06666667, %v161
      %v164 = vld [vmem:[%s144] sm:$0xff]
      %v167 = vunpack.c.l.s4 839922192
      %v168 = vunpack.c.0.s8 %v167
      %v169 = vlaneseq
      %v170 = vshrl.u32 %v169, 7
      %v171 = vsub.s32 %v168, %v170
      %v172 = vrot.slane %v163, %v171
      %v174 = vmul.f32 %v164, %v172
      %v175 = vadd.f32 %v174, 0.0
      %176 = vst [vmem:[%s154] sm:$0xff] %v175
      %s177 = smul.u32 2, %s17
      %p178 = scmp.lt.s32.totalorder %s16, 1
      %s179 = scalar_select %p178, %s16, 1
      %p180 = scmp.lt.s32.totalorder %s177, 1
      %s181 = scalar_select %p180, %s177, 1
      %s182 = smul.addr %s179, 2
      %s183 = sadd.s32 %s181, %s182
      %s184 = smul.addr %s183, 4
      %s185 = scalar_lea.vmem %s1, %s184
      // Predicated region
      $region25: #{forward.1} parent=23 // pred_check
        %p186 = pneg %p72
      $region26: #{forward.1} parent=23 // pred_check_branch
        %188 = sbr.rel (%p186) target = $region28
      $region27: #{forward.1} parent=23 // pred_region
        %s189 = smul.u32 2, %s17
      $region28: #{forward.1} parent=23 // pred_fallthru
        _
    $region24: #{forward.1} parent=5 // pred_fallthru
      _
    %p190 = scmp.le.s32.totalorder 2, %s7
    // Predicated region
    $region29: #{forward.1} parent=5 // pred_check
      %p191 = pneg %p190
    $region30: #{forward.1} parent=5 // pred_check_branch
      %193 = sbr.rel (%p191) target = $region32
    $region31: #{forward.1} parent=5 // pred_region
      %s194 = ssub.s32 %s7, 2
      // Predicated region
      $region33: #{forward.1} parent=31 // pred_check
        %p195 = pneg %p78
      $region34: #{forward.1} parent=31 // pred_check_branch
        %197 = sbr.rel (%p195) target = $region36
      $region35: #{forward.1} parent=31 // pred_region
        %s198 = smul.u32 2, %s19
        %p199 = scmp.lt.s32.totalorder %s18, 1
        %s200 = scalar_select %p199, %s18, 1
        %p201 = scmp.lt.s32.totalorder %s198, 1
        %s202 = scalar_select %p201, %s198, 1
        %s203 = smul.addr %s200, 2
        %s204 = sadd.s32 %s202, %s203
        %s205 = smul.addr %s204, 4
        %s206 = scalar_lea.vmem %s1, %s205
      $region36: #{forward.1} parent=31 // pred_fallthru
        _
    $region32: #{forward.1} parent=5 // pred_fallthru
      _
  $region6: #{forward.1} parent=0 // loop_footer
    %s11 = sadd.s32 1, %s7
  $region7: #{forward.1} parent=0 // loop_footer_branch
    %6 = sbr.rel target = $region3
  $region8: #{forward.1} parent=0 // loop_exit
    _

</llo_original>
